<compile_context>
chip_gen: v6e
topology: v6e:2x2x1
jax: 0.10.0
libtpu: 0.0.40
codegen_flags: <defaults>
</compile_context>

<pallas_src>
import functools

import numpy as np
import jax
import jax.numpy as jnp
from jax import lax
from jax.experimental import pallas as pl
from jax.experimental.pallas import tpu as pltpu

NEG_SLOPE = 0.2  # LeakyReLU(0.2)


# --------------------------------- kernel -----------------------------------
def _conv3x3_rows(xrows, t_ref, img_rows):
    """3x3 conv (pad=1, stride=1) on row-flattened images.

    xrows   : (R, W*Cin) f32 value; R = (#images in block) * H, rows of each
              image stored contiguously, channel-fastest within each row.
    t_ref   : (3, W*Cin, W*Cout) banded weights, one matrix per kernel row dy.
    img_rows: H (static) -- used to mask the row shifts at image boundaries.
    Returns (R, W*Cout) f32.
    """
    R, WC = xrows.shape
    zrow = jnp.zeros((1, WC), xrows.dtype)
    # Row h-1 (kernel row dy=0) and row h+1 (dy=2), zero-padded in height.
    up = jnp.concatenate([zrow, xrows[:R - 1, :]], axis=0)
    dn = jnp.concatenate([xrows[1:, :], zrow], axis=0)
    # Zero the rows that crossed an image boundary inside the stacked block.
    ridx = lax.broadcasted_iota(jnp.int32, (R, 1), 0)
    up = jnp.where(ridx % img_rows == 0, 0.0, up)
    dn = jnp.where(ridx % img_rows == img_rows - 1, 0.0, dn)
    # Width taps + width zero-padding live inside the banded weights ->
    # 3 full-contraction MXU matmuls, no per-tap window materialization.
    acc = jnp.dot(up, t_ref[0], preferred_element_type=jnp.float32)
    acc = acc + jnp.dot(xrows, t_ref[1], preferred_element_type=jnp.float32)
    acc = acc + jnp.dot(dn, t_ref[2], preferred_element_type=jnp.float32)
    return acc


def _basic_block_kernel(x_ref, t1_ref, t2_ref, s1_ref, b1_ref, s2_ref, b2_ref,
                        out_ref, *, img_rows):
    # x_ref  : (NB*H, W*C)   row-flattened input block (also used as residual)
    # t*_ref : (3, W*C, W*C) banded conv weights (per kernel row dy)
    # s*/b*  : (1, W*C)      folded BN scale/bias, tiled across W (channel fastest)
    # out_ref: (NB*H, W*C)
    xr = x_ref[...]

    h = _conv3x3_rows(xr, t1_ref, img_rows)            # conv1
    h = h * s1_ref[...] + b1_ref[...]                  # bn1 (eval mode, folded)
    h = jnp.where(h > 0, h, NEG_SLOPE * h)             # LeakyReLU(0.2)

    h = _conv3x3_rows(h, t2_ref, img_rows)             # conv2
    h = h * s2_ref[...] + b2_ref[...]                  # bn2
    h = h + xr                                         # residual (inplanes == planes)
    h = jnp.where(h > 0, h, NEG_SLOPE * h)             # LeakyReLU(0.2)

    out_ref[...] = h                                   # single lane-dense store


# --------------------------------- wrapper ----------------------------------
def _banded_conv_weights(w_oihw, width):
    """Fold the 3 width taps (+ zero width-padding) of a 3x3 conv into one
    (W*Cin, W*Cout) matrix per kernel row dy.  Returns (3, W*Cin, W*Cout)."""
    w_hwio = jnp.transpose(w_oihw, (2, 3, 1, 0)).astype(jnp.float32)  # (3,3,Ci,Co)
    kh, kw, cin, cout = w_hwio.shape
    band = np.zeros((kw, width, width), np.float32)
    for dx in range(kw):
        for w in range(width):
            p = w + dx - kw // 2
            if 0 <= p < width:
                band[dx, p, w] = 1.0
    t = jnp.einsum('dpw,ydio->ypiwo', jnp.asarray(band), w_hwio)
    return t.reshape(kh, width * cin, width * cout)


def basic_block_forward(x_nchw, w1_oihw, w2_oihw, bn1, bn2,
                        eps=1e-5, batch_block=None):
    """x: (N,C,H,W) f32; w: (Cout,Cin,3,3); bn = (gamma, beta, mean, var)."""
    N, C, H, W = x_nchw.shape
    # Residual add requires inplanes == planes (stride=1, upsample=None path).
    assert w1_oihw.shape[0] == C and w2_oihw.shape[0] == C, \
        "BasicBlock residual path needs Cout == Cin"

    # Default: fold the whole batch into one grid step (best for single-TC
    # v5e/v6e, which are per-step-overhead bound at this size).  On v7x pass
    # batch_block=1 so grid=(N,) parallel-splits across the two TensorCores.
    nb = N if batch_block is None else batch_block
    assert N % nb == 0
    block_rows = nb * H

    # NCHW -> row-flattened (N*H, W*C), channels fastest within a row.
    x_rows = jnp.transpose(x_nchw, (0, 2, 3, 1)).reshape(N * H, W * C)
    x_rows = x_rows.astype(jnp.float32)

    t1 = _banded_conv_weights(w1_oihw, W)   # (3, W*C, W*C)
    t2 = _banded_conv_weights(w2_oihw, W)

    def fold_bn(p):
        gamma, beta, mean, var = p
        scale = gamma / jnp.sqrt(var + eps)
        bias = beta - mean * scale
        # Tile the per-channel params across the W*C lane axis (channel fastest).
        return (jnp.tile(scale, W).reshape(1, W * C).astype(jnp.float32),
                jnp.tile(bias, W).reshape(1, W * C).astype(jnp.float32))

    s1, b1 = fold_bn(bn1)
    s2, b2 = fold_bn(bn2)

    kernel = functools.partial(_basic_block_kernel, img_rows=H)

    out_rows = pl.pallas_call(
        kernel,
        out_shape=jax.ShapeDtypeStruct((N * H, W * C), jnp.float32),
        grid_spec=pltpu.PrefetchScalarGridSpec(
            num_scalar_prefetch=0,
            grid=(N // nb,),
            in_specs=[
                pl.BlockSpec((block_rows, W * C), lambda n: (n, 0)),
                # Constant index maps: weights / BN params stay VMEM-resident
                # across grid steps (not re-fetched per step).
                pl.BlockSpec((3, W * C, W * C), lambda n: (0, 0, 0)),
                pl.BlockSpec((3, W * C, W * C), lambda n: (0, 0, 0)),
                pl.BlockSpec((1, W * C), lambda n: (0, 0)),
                pl.BlockSpec((1, W * C), lambda n: (0, 0)),
                pl.BlockSpec((1, W * C), lambda n: (0, 0)),
                pl.BlockSpec((1, W * C), lambda n: (0, 0)),
            ],
            out_specs=pl.BlockSpec((block_rows, W * C), lambda n: (n, 0)),
        ),
        compiler_params=pltpu.CompilerParams(
            dimension_semantics=("parallel",)),
    )(x_rows, t1, t2, s1, b1, s2, b2)

    # TODO(synk): for production-scale H/W/C, the banded-weight trick
    # (O(W^2*Cin*Cout) weight bytes) and full-image blocks should be replaced
    # by an H-tiled (halo=1) im2col variant (optionally bf16 inputs on v6e/v7x)
    # with an explicit vmem_limit_bytes.
    out = out_rows.reshape(N, H, W, C)
    return jnp.transpose(out, (0, 3, 1, 2))            # back to NCHW


# ---------------- plain-JAX reference (for correctness check) ----------------
def _ref_forward(x, w1, w2, bn1, bn2, eps=1e-5):
    def conv(x, w):
        return lax.conv_general_dilated(
            x, w, (1, 1), ((1, 1), (1, 1)),
            dimension_numbers=('NCHW', 'OIHW', 'NCHW'))

    def bn(x, p):
        g, b, m, v = p
        return (g[None, :, None, None] * (x - m[None, :, None, None])
                / jnp.sqrt(v[None, :, None, None] + eps)
                + b[None, :, None, None])

    def lrelu(x):
        return jnp.where(x > 0, x, NEG_SLOPE * x)

    out = lrelu(bn(conv(x, w1), bn1))
    out = bn(conv(out, w2), bn2)
    return lrelu(out + x)


# ---------------- parameter setup (deterministic, synthetic) -----------------
def _spectral_norm(w, key, n_iter=1):
    # SpectralNorm re-parameterization: w / sigma_max (one power iteration).
    w_mat = w.reshape(w.shape[0], -1)
    u = jax.random.normal(key, (w.shape[0],), jnp.float32)
    u = u / (jnp.linalg.norm(u) + 1e-12)
    v = u  # placeholder
    for _ in range(n_iter):
        v = w_mat.T @ u
        v = v / (jnp.linalg.norm(v) + 1e-12)
        u = w_mat @ v
        u = u / (jnp.linalg.norm(u) + 1e-12)
    sigma = u @ (w_mat @ v)
    return w / sigma


if __name__ == "__main__":
    key = jax.random.PRNGKey(0)
    keys = jax.random.split(key, 8)

    # inplanes = planes = 4, stride = 1, upsample = None, large_kernel = False
    N, C, H, W = 2, 4, 16, 16
    x = jax.random.normal(keys[0], (N, C, H, W), jnp.float32)

    w1 = _spectral_norm(0.1 * jax.random.normal(keys[1], (C, C, 3, 3), jnp.float32), keys[2])
    w2 = _spectral_norm(0.1 * jax.random.normal(keys[3], (C, C, 3, 3), jnp.float32), keys[4])

    def bn_params(k):
        ks = jax.random.split(k, 4)
        gamma = 1.0 + 0.1 * jax.random.normal(ks[0], (C,), jnp.float32)
        beta = 0.1 * jax.random.normal(ks[1], (C,), jnp.float32)
        mean = 0.1 * jax.random.normal(ks[2], (C,), jnp.float32)
        var = jnp.abs(jax.random.normal(ks[3], (C,), jnp.float32)) + 0.5
        return gamma, beta, mean, var

    bn1 = bn_params(keys[5])
    bn2 = bn_params(keys[6])

    out = basic_block_forward(x, w1, w2, bn1, bn2)
    out = jax.block_until_ready(out)

    ref = _ref_forward(x, w1, w2, bn1, bn2)
    np.testing.assert_allclose(np.asarray(out), np.asarray(ref), rtol=1e-4, atol=1e-4)

    # TODO(synk): training-mode BatchNorm (batch statistics) would need a
    # cross-batch reduction pass; eval-mode (running stats) semantics are used.
    print("KERNEL_OK")
</pallas_src>

<mosaic_0001>
module attributes {stable_mosaic.version = 11 : i64} {
  func.func @_basic_block_kernel(%arg0: i32, %arg1: memref<32x64xf32, #tpu.memory_space<vmem>>, %arg2: memref<3x64x64xf32, #tpu.memory_space<vmem>>, %arg3: memref<3x64x64xf32, #tpu.memory_space<vmem>>, %arg4: memref<1x64xf32, #tpu.memory_space<vmem>>, %arg5: memref<1x64xf32, #tpu.memory_space<vmem>>, %arg6: memref<1x64xf32, #tpu.memory_space<vmem>>, %arg7: memref<1x64xf32, #tpu.memory_space<vmem>>, %arg8: memref<32x64xf32, #tpu.memory_space<vmem>>) attributes {dimension_semantics = [#tpu.dimension_semantics<parallel>], iteration_bounds = array<i64: 1>, scalar_prefetch = 0 : i64, scratch_operands = 0 : i64, tpu.core_type = #tpu.core_type<tc>, window_params = [{transform_indices = @transform_0, window_bounds = array<i64: 32, 64>}, {pipeline_mode = #tpu.pipeline_mode<synchronous>, transform_indices = @transform_1, window_bounds = array<i64: 3, 64, 64>}, {pipeline_mode = #tpu.pipeline_mode<synchronous>, transform_indices = @transform_2, window_bounds = array<i64: 3, 64, 64>}, {pipeline_mode = #tpu.pipeline_mode<synchronous>, transform_indices = @transform_3, window_bounds = array<i64: 1, 64>}, {pipeline_mode = #tpu.pipeline_mode<synchronous>, transform_indices = @transform_4, window_bounds = array<i64: 1, 64>}, {pipeline_mode = #tpu.pipeline_mode<synchronous>, transform_indices = @transform_5, window_bounds = array<i64: 1, 64>}, {pipeline_mode = #tpu.pipeline_mode<synchronous>, transform_indices = @transform_6, window_bounds = array<i64: 1, 64>}, {transform_indices = @transform_7, window_bounds = array<i64: 32, 64>}]} {
    %c0 = arith.constant 0 : index
    %c0_0 = arith.constant 0 : index
    %0 = vector.load %arg1[%c0, %c0_0] : memref<32x64xf32, #tpu.memory_space<vmem>>, vector<32x64xf32>
    %cst = arith.constant 0.000000e+00 : f32
    %1 = vector.broadcast %cst : f32 to vector<1x64xf32>
    %2 = vector.extract_strided_slice %0 {offsets = [0, 0], sizes = [31, 64], strides = [1, 1]} : vector<32x64xf32> to vector<31x64xf32>
    %3 = tpu.concatenate %1, %2 in 0 : vector<1x64xf32>, vector<31x64xf32> -> vector<32x64xf32>
    %4 = vector.extract_strided_slice %0 {offsets = [1, 0], sizes = [31, 64], strides = [1, 1]} : vector<32x64xf32> to vector<31x64xf32>
    %5 = tpu.concatenate %4, %1 in 0 : vector<31x64xf32>, vector<1x64xf32> -> vector<32x64xf32>
    %6 = tpu.iota {dimensions = array<i32: 0>} : vector<32x1xi32>
    %c16_i32 = arith.constant 16 : i32
    %c0_i32 = arith.constant 0 : i32
    %7 = arith.cmpi eq, %c16_i32, %c0_i32 : i32
    %c1_i32 = arith.constant 1 : i32
    %8 = arith.select %7, %c1_i32, %c16_i32 : i32
    %9 = vector.broadcast %8 : i32 to vector<32x1xi32>
    %10 = arith.remsi %6, %9 : vector<32x1xi32>
    %c0_i32_1 = arith.constant 0 : i32
    %11 = vector.broadcast %c0_i32_1 : i32 to vector<32x1xi32>
    %12 = arith.cmpi ne, %10, %11 : vector<32x1xi32>
    %c0_i32_2 = arith.constant 0 : i32
    %13 = vector.broadcast %c0_i32_2 : i32 to vector<32x1xi32>
    %14 = arith.cmpi slt, %10, %13 : vector<32x1xi32>
    %c0_i32_3 = arith.constant 0 : i32
    %15 = arith.cmpi slt, %8, %c0_i32_3 : i32
    %16 = vector.broadcast %15 : i1 to vector<32x1xi1>
    %17 = vector.broadcast %16 : vector<32x1xi1> to vector<32x1xi1>
    %18 = arith.xori %14, %17 : vector<32x1xi1>
    %19 = arith.andi %18, %12 : vector<32x1xi1>
    %20 = vector.broadcast %8 : i32 to vector<32x1xi32>
    %21 = arith.addi %10, %20 : vector<32x1xi32>
    %22 = arith.select %19, %21, %10 : vector<32x1xi1>, vector<32x1xi32>
    %c0_i32_4 = arith.constant 0 : i32
    %23 = vector.broadcast %c0_i32_4 : i32 to vector<32x1xi32>
    %24 = arith.cmpi eq, %22, %23 : vector<32x1xi32>
    %cst_5 = arith.constant 0.000000e+00 : f32
    %25 = vector.shape_cast %24 : vector<32x1xi1> to vector<32x1xi1>
    %26 = vector.broadcast %25 : vector<32x1xi1> to vector<32x64xi1>
    %27 = vector.broadcast %cst_5 : f32 to vector<32x64xf32>
    %28 = arith.select %26, %27, %3 : vector<32x64xi1>, vector<32x64xf32>
    %c16_i32_6 = arith.constant 16 : i32
    %c0_i32_7 = arith.constant 0 : i32
    %29 = arith.cmpi eq, %c16_i32_6, %c0_i32_7 : i32
    %c1_i32_8 = arith.constant 1 : i32
    %30 = arith.select %29, %c1_i32_8, %c16_i32_6 : i32
    %31 = vector.broadcast %30 : i32 to vector<32x1xi32>
    %32 = arith.remsi %6, %31 : vector<32x1xi32>
    %c0_i32_9 = arith.constant 0 : i32
    %33 = vector.broadcast %c0_i32_9 : i32 to vector<32x1xi32>
    %34 = arith.cmpi ne, %32, %33 : vector<32x1xi32>
    %c0_i32_10 = arith.constant 0 : i32
    %35 = vector.broadcast %c0_i32_10 : i32 to vector<32x1xi32>
    %36 = arith.cmpi slt, %32, %35 : vector<32x1xi32>
    %c0_i32_11 = arith.constant 0 : i32
    %37 = arith.cmpi slt, %30, %c0_i32_11 : i32
    %38 = vector.broadcast %37 : i1 to vector<32x1xi1>
    %39 = vector.broadcast %38 : vector<32x1xi1> to vector<32x1xi1>
    %40 = arith.xori %36, %39 : vector<32x1xi1>
    %41 = arith.andi %40, %34 : vector<32x1xi1>
    %42 = vector.broadcast %30 : i32 to vector<32x1xi32>
    %43 = arith.addi %32, %42 : vector<32x1xi32>
    %44 = arith.select %41, %43, %32 : vector<32x1xi1>, vector<32x1xi32>
    %c15_i32 = arith.constant 15 : i32
    %45 = vector.broadcast %c15_i32 : i32 to vector<32x1xi32>
    %46 = arith.cmpi eq, %44, %45 : vector<32x1xi32>
    %cst_12 = arith.constant 0.000000e+00 : f32
    %47 = vector.shape_cast %46 : vector<32x1xi1> to vector<32x1xi1>
    %48 = vector.broadcast %47 : vector<32x1xi1> to vector<32x64xi1>
    %49 = vector.broadcast %cst_12 : f32 to vector<32x64xf32>
    %50 = arith.select %48, %49, %5 : vector<32x64xi1>, vector<32x64xf32>
    %c0_13 = arith.constant 0 : index
    %c0_14 = arith.constant 0 : index
    %c0_15 = arith.constant 0 : index
    %51 = vector.load %arg2[%c0_13, %c0_14, %c0_15] : memref<3x64x64xf32, #tpu.memory_space<vmem>>, vector<1x64x64xf32>
    %52 = vector.shape_cast %51 : vector<1x64x64xf32> to vector<64x64xf32>
    %cst_16 = arith.constant dense<0.000000e+00> : vector<32x64xf32>
    %53 = tpu.matmul %28, %52, %cst_16 {dimension_numbers = #tpu.dot_dimension_numbers<[1], [0], [0], [1], [0, 0, 1, 1], [], []>} : vector<32x64xf32>, vector<64x64xf32>, vector<32x64xf32> -> vector<32x64xf32>
    %c1 = arith.constant 1 : index
    %c0_17 = arith.constant 0 : index
    %c0_18 = arith.constant 0 : index
    %54 = vector.load %arg2[%c1, %c0_17, %c0_18] : memref<3x64x64xf32, #tpu.memory_space<vmem>>, vector<1x64x64xf32>
    %55 = vector.shape_cast %54 : vector<1x64x64xf32> to vector<64x64xf32>
    %cst_19 = arith.constant dense<0.000000e+00> : vector<32x64xf32>
    %56 = tpu.matmul %0, %55, %cst_19 {dimension_numbers = #tpu.dot_dimension_numbers<[1], [0], [0], [1], [0, 0, 1, 1], [], []>} : vector<32x64xf32>, vector<64x64xf32>, vector<32x64xf32> -> vector<32x64xf32>
    %57 = arith.addf %53, %56 : vector<32x64xf32>
    %c2 = arith.constant 2 : index
    %c0_20 = arith.constant 0 : index
    %c0_21 = arith.constant 0 : index
    %58 = vector.load %arg2[%c2, %c0_20, %c0_21] : memref<3x64x64xf32, #tpu.memory_space<vmem>>, vector<1x64x64xf32>
    %59 = vector.shape_cast %58 : vector<1x64x64xf32> to vector<64x64xf32>
    %cst_22 = arith.constant dense<0.000000e+00> : vector<32x64xf32>
    %60 = tpu.matmul %50, %59, %cst_22 {dimension_numbers = #tpu.dot_dimension_numbers<[1], [0], [0], [1], [0, 0, 1, 1], [], []>} : vector<32x64xf32>, vector<64x64xf32>, vector<32x64xf32> -> vector<32x64xf32>
    %61 = arith.addf %57, %60 : vector<32x64xf32>
    %c0_23 = arith.constant 0 : index
    %c0_24 = arith.constant 0 : index
    %62 = vector.load %arg4[%c0_23, %c0_24] : memref<1x64xf32, #tpu.memory_space<vmem>>, vector<1x64xf32>
    %63 = vector.broadcast %62 : vector<1x64xf32> to vector<32x64xf32>
    %64 = arith.mulf %61, %63 : vector<32x64xf32>
    %c0_25 = arith.constant 0 : index
    %c0_26 = arith.constant 0 : index
    %65 = vector.load %arg5[%c0_25, %c0_26] : memref<1x64xf32, #tpu.memory_space<vmem>>, vector<1x64xf32>
    %66 = vector.broadcast %65 : vector<1x64xf32> to vector<32x64xf32>
    %67 = arith.addf %64, %66 : vector<32x64xf32>
    %cst_27 = arith.constant 0.000000e+00 : f32
    %68 = vector.broadcast %cst_27 : f32 to vector<32x64xf32>
    %69 = arith.cmpf ogt, %67, %68 : vector<32x64xf32>
    %cst_28 = arith.constant 2.000000e-01 : f32
    %70 = vector.broadcast %cst_28 : f32 to vector<32x64xf32>
    %71 = arith.mulf %70, %67 : vector<32x64xf32>
    %72 = arith.select %69, %67, %71 : vector<32x64xi1>, vector<32x64xf32>
    %cst_29 = arith.constant 0.000000e+00 : f32
    %73 = vector.broadcast %cst_29 : f32 to vector<1x64xf32>
    %74 = vector.extract_strided_slice %72 {offsets = [0, 0], sizes = [31, 64], strides = [1, 1]} : vector<32x64xf32> to vector<31x64xf32>
    %75 = tpu.concatenate %73, %74 in 0 : vector<1x64xf32>, vector<31x64xf32> -> vector<32x64xf32>
    %76 = vector.extract_strided_slice %72 {offsets = [1, 0], sizes = [31, 64], strides = [1, 1]} : vector<32x64xf32> to vector<31x64xf32>
    %77 = tpu.concatenate %76, %73 in 0 : vector<31x64xf32>, vector<1x64xf32> -> vector<32x64xf32>
    %78 = tpu.iota {dimensions = array<i32: 0>} : vector<32x1xi32>
    %c16_i32_30 = arith.constant 16 : i32
    %c0_i32_31 = arith.constant 0 : i32
    %79 = arith.cmpi eq, %c16_i32_30, %c0_i32_31 : i32
    %c1_i32_32 = arith.constant 1 : i32
    %80 = arith.select %79, %c1_i32_32, %c16_i32_30 : i32
    %81 = vector.broadcast %80 : i32 to vector<32x1xi32>
    %82 = arith.remsi %78, %81 : vector<32x1xi32>
    %c0_i32_33 = arith.constant 0 : i32
    %83 = vector.broadcast %c0_i32_33 : i32 to vector<32x1xi32>
    %84 = arith.cmpi ne, %82, %83 : vector<32x1xi32>
    %c0_i32_34 = arith.constant 0 : i32
    %85 = vector.broadcast %c0_i32_34 : i32 to vector<32x1xi32>
    %86 = arith.cmpi slt, %82, %85 : vector<32x1xi32>
    %c0_i32_35 = arith.constant 0 : i32
    %87 = arith.cmpi slt, %80, %c0_i32_35 : i32
    %88 = vector.broadcast %87 : i1 to vector<32x1xi1>
    %89 = vector.broadcast %88 : vector<32x1xi1> to vector<32x1xi1>
    %90 = arith.xori %86, %89 : vector<32x1xi1>
    %91 = arith.andi %90, %84 : vector<32x1xi1>
    %92 = vector.broadcast %80 : i32 to vector<32x1xi32>
    %93 = arith.addi %82, %92 : vector<32x1xi32>
    %94 = arith.select %91, %93, %82 : vector<32x1xi1>, vector<32x1xi32>
    %c0_i32_36 = arith.constant 0 : i32
    %95 = vector.broadcast %c0_i32_36 : i32 to vector<32x1xi32>
    %96 = arith.cmpi eq, %94, %95 : vector<32x1xi32>
    %cst_37 = arith.constant 0.000000e+00 : f32
    %97 = vector.shape_cast %96 : vector<32x1xi1> to vector<32x1xi1>
    %98 = vector.broadcast %97 : vector<32x1xi1> to vector<32x64xi1>
    %99 = vector.broadcast %cst_37 : f32 to vector<32x64xf32>
    %100 = arith.select %98, %99, %75 : vector<32x64xi1>, vector<32x64xf32>
    %c16_i32_38 = arith.constant 16 : i32
    %c0_i32_39 = arith.constant 0 : i32
    %101 = arith.cmpi eq, %c16_i32_38, %c0_i32_39 : i32
    %c1_i32_40 = arith.constant 1 : i32
    %102 = arith.select %101, %c1_i32_40, %c16_i32_38 : i32
    %103 = vector.broadcast %102 : i32 to vector<32x1xi32>
    %104 = arith.remsi %78, %103 : vector<32x1xi32>
    %c0_i32_41 = arith.constant 0 : i32
    %105 = vector.broadcast %c0_i32_41 : i32 to vector<32x1xi32>
    %106 = arith.cmpi ne, %104, %105 : vector<32x1xi32>
    %c0_i32_42 = arith.constant 0 : i32
    %107 = vector.broadcast %c0_i32_42 : i32 to vector<32x1xi32>
    %108 = arith.cmpi slt, %104, %107 : vector<32x1xi32>
    %c0_i32_43 = arith.constant 0 : i32
    %109 = arith.cmpi slt, %102, %c0_i32_43 : i32
    %110 = vector.broadcast %109 : i1 to vector<32x1xi1>
    %111 = vector.broadcast %110 : vector<32x1xi1> to vector<32x1xi1>
    %112 = arith.xori %108, %111 : vector<32x1xi1>
    %113 = arith.andi %112, %106 : vector<32x1xi1>
    %114 = vector.broadcast %102 : i32 to vector<32x1xi32>
    %115 = arith.addi %104, %114 : vector<32x1xi32>
    %116 = arith.select %113, %115, %104 : vector<32x1xi1>, vector<32x1xi32>
    %c15_i32_44 = arith.constant 15 : i32
    %117 = vector.broadcast %c15_i32_44 : i32 to vector<32x1xi32>
    %118 = arith.cmpi eq, %116, %117 : vector<32x1xi32>
    %cst_45 = arith.constant 0.000000e+00 : f32
    %119 = vector.shape_cast %118 : vector<32x1xi1> to vector<32x1xi1>
    %120 = vector.broadcast %119 : vector<32x1xi1> to vector<32x64xi1>
    %121 = vector.broadcast %cst_45 : f32 to vector<32x64xf32>
    %122 = arith.select %120, %121, %77 : vector<32x64xi1>, vector<32x64xf32>
    %c0_46 = arith.constant 0 : index
    %c0_47 = arith.constant 0 : index
    %c0_48 = arith.constant 0 : index
    %123 = vector.load %arg3[%c0_46, %c0_47, %c0_48] : memref<3x64x64xf32, #tpu.memory_space<vmem>>, vector<1x64x64xf32>
    %124 = vector.shape_cast %123 : vector<1x64x64xf32> to vector<64x64xf32>
    %cst_49 = arith.constant dense<0.000000e+00> : vector<32x64xf32>
    %125 = tpu.matmul %100, %124, %cst_49 {dimension_numbers = #tpu.dot_dimension_numbers<[1], [0], [0], [1], [0, 0, 1, 1], [], []>} : vector<32x64xf32>, vector<64x64xf32>, vector<32x64xf32> -> vector<32x64xf32>
    %c1_50 = arith.constant 1 : index
    %c0_51 = arith.constant 0 : index
    %c0_52 = arith.constant 0 : index
    %126 = vector.load %arg3[%c1_50, %c0_51, %c0_52] : memref<3x64x64xf32, #tpu.memory_space<vmem>>, vector<1x64x64xf32>
    %127 = vector.shape_cast %126 : vector<1x64x64xf32> to vector<64x64xf32>
    %cst_53 = arith.constant dense<0.000000e+00> : vector<32x64xf32>
    %128 = tpu.matmul %72, %127, %cst_53 {dimension_numbers = #tpu.dot_dimension_numbers<[1], [0], [0], [1], [0, 0, 1, 1], [], []>} : vector<32x64xf32>, vector<64x64xf32>, vector<32x64xf32> -> vector<32x64xf32>
    %129 = arith.addf %125, %128 : vector<32x64xf32>
    %c2_54 = arith.constant 2 : index
    %c0_55 = arith.constant 0 : index
    %c0_56 = arith.constant 0 : index
    %130 = vector.load %arg3[%c2_54, %c0_55, %c0_56] : memref<3x64x64xf32, #tpu.memory_space<vmem>>, vector<1x64x64xf32>
    %131 = vector.shape_cast %130 : vector<1x64x64xf32> to vector<64x64xf32>
    %cst_57 = arith.constant dense<0.000000e+00> : vector<32x64xf32>
    %132 = tpu.matmul %122, %131, %cst_57 {dimension_numbers = #tpu.dot_dimension_numbers<[1], [0], [0], [1], [0, 0, 1, 1], [], []>} : vector<32x64xf32>, vector<64x64xf32>, vector<32x64xf32> -> vector<32x64xf32>
    %133 = arith.addf %129, %132 : vector<32x64xf32>
    %c0_58 = arith.constant 0 : index
    %c0_59 = arith.constant 0 : index
    %134 = vector.load %arg6[%c0_58, %c0_59] : memref<1x64xf32, #tpu.memory_space<vmem>>, vector<1x64xf32>
    %135 = vector.broadcast %134 : vector<1x64xf32> to vector<32x64xf32>
    %136 = arith.mulf %133, %135 : vector<32x64xf32>
    %c0_60 = arith.constant 0 : index
    %c0_61 = arith.constant 0 : index
    %137 = vector.load %arg7[%c0_60, %c0_61] : memref<1x64xf32, #tpu.memory_space<vmem>>, vector<1x64xf32>
    %138 = vector.broadcast %137 : vector<1x64xf32> to vector<32x64xf32>
    %139 = arith.addf %136, %138 : vector<32x64xf32>
    %140 = arith.addf %139, %0 : vector<32x64xf32>
    %cst_62 = arith.constant 0.000000e+00 : f32
    %141 = vector.broadcast %cst_62 : f32 to vector<32x64xf32>
    %142 = arith.cmpf ogt, %140, %141 : vector<32x64xf32>
    %cst_63 = arith.constant 2.000000e-01 : f32
    %143 = vector.broadcast %cst_63 : f32 to vector<32x64xf32>
    %144 = arith.mulf %143, %140 : vector<32x64xf32>
    %145 = arith.select %142, %140, %144 : vector<32x64xi1>, vector<32x64xf32>
    %c0_64 = arith.constant 0 : index
    %c0_65 = arith.constant 0 : index
    %146 = vector.load %arg8[%c0_64, %c0_65] : memref<32x64xf32, #tpu.memory_space<vmem>>, vector<32x64xf32>
    tpu.vector_store %arg8[%c0_64, %c0_65], %145 {strides = array<i32>} : memref<32x64xf32, #tpu.memory_space<vmem>>, vector<32x64xf32>,
    return
  }
  func.func @transform_0(%arg0: i32) -> (i32, i32) {
    %c0_i32 = arith.constant 0 : i32
    %c0_i32_0 = arith.constant 0 : i32
    return %arg0, %c0_i32 : i32, i32
  }
  func.func @transform_1(%arg0: i32) -> (i32, i32, i32) {
    %c0_i32 = arith.constant 0 : i32
    %c0_i32_0 = arith.constant 0 : i32
    %c0_i32_1 = arith.constant 0 : i32
    %c0_i32_2 = arith.constant 0 : i32
    return %c0_i32, %c0_i32_0, %c0_i32_1 : i32, i32, i32
  }
  func.func @transform_2(%arg0: i32) -> (i32, i32, i32) {
    %c0_i32 = arith.constant 0 : i32
    %c0_i32_0 = arith.constant 0 : i32
    %c0_i32_1 = arith.constant 0 : i32
    %c0_i32_2 = arith.constant 0 : i32
    return %c0_i32, %c0_i32_0, %c0_i32_1 : i32, i32, i32
  }
  func.func @transform_3(%arg0: i32) -> (i32, i32) {
    %c0_i32 = arith.constant 0 : i32
    %c0_i32_0 = arith.constant 0 : i32
    %c0_i32_1 = arith.constant 0 : i32
    return %c0_i32, %c0_i32_0 : i32, i32
  }
  func.func @transform_4(%arg0: i32) -> (i32, i32) {
    %c0_i32 = arith.constant 0 : i32
    %c0_i32_0 = arith.constant 0 : i32
    %c0_i32_1 = arith.constant 0 : i32
    return %c0_i32, %c0_i32_0 : i32, i32
  }
  func.func @transform_5(%arg0: i32) -> (i32, i32) {
    %c0_i32 = arith.constant 0 : i32
    %c0_i32_0 = arith.constant 0 : i32
    %c0_i32_1 = arith.constant 0 : i32
    return %c0_i32, %c0_i32_0 : i32, i32
  }
  func.func @transform_6(%arg0: i32) -> (i32, i32) {
    %c0_i32 = arith.constant 0 : i32
    %c0_i32_0 = arith.constant 0 : i32
    %c0_i32_1 = arith.constant 0 : i32
    return %c0_i32, %c0_i32_0 : i32, i32
  }
  func.func @transform_7(%arg0: i32) -> (i32, i32) {
    %c0_i32 = arith.constant 0 : i32
    %c0_i32_0 = arith.constant 0 : i32
    return %arg0, %c0_i32 : i32, i32
  }
}

</mosaic_0001>

<llo_original>
// kernel: tpu_custom_call.1
$region0: #{tpu_custom_call.1}
  #allocation0 [shape = 'u32[]', space=smem, size = 0x4, offset = 0x4, fixed_abs, tag = 'smem constant byte address 0x4 - core index']
  #allocation1 [shape = 'u32[144,128]{1,0:T(1,128)}', space=vmem, size = 0x12000, scoped, tag = 'internal scratch']
  %s0 = inlined_call_operand.hbm [shape: f32[32,64], index: 0, kind: input, shape index: {}]
  %s1 = inlined_call_operand.hbm [shape: f32[3,64,64], index: 1, kind: input, shape index: {}]
  %s2 = inlined_call_operand.hbm [shape: f32[3,64,64], index: 2, kind: input, shape index: {}]
  %s3 = inlined_call_operand.vmem [shape: f32[1,64], index: 3, kind: input, shape index: {}]
  %s4 = inlined_call_operand.vmem [shape: f32[1,64], index: 4, kind: input, shape index: {}]
  %s5 = inlined_call_operand.vmem [shape: f32[1,64], index: 5, kind: input, shape index: {}]
  %s6 = inlined_call_operand.vmem [shape: f32[1,64], index: 6, kind: input, shape index: {}]
  %s7 = inlined_call_operand.hbm [shape: f32[32,64], index: 7, kind: output, shape index: {}]
  %s8 = sld [smem:[#allocation0]]
  $region50: #{tpu_custom_call.1} parent=0
    _
  %s10 = ssub.s32 1, %s8
  %s11 = scalar_select 0, %s10, %s8
  $region1: #{tpu_custom_call.1} parent=0
    #allocation2 [shape = 'u8[16384]{0}', space=vmem, size = 0x4000, scoped, tag = 'input window, operand 0, single buffered']
    #allocation3 [shape = 's32[1]{0}', space=sflag, size = 0x4, scoped, tag = 'scoped memory for tpu_custom_call.1']
    #allocation4 [shape = 's32[1]{0}', space=sflag, size = 0x4, scoped, tag = 'scoped memory for tpu_custom_call.1']
    #allocation5 [shape = 'u8[98304]{0}', space=vmem, size = 0x18000, scoped, tag = 'input window, operand 1, single buffered']
    #allocation6 [shape = 's32[1]{0}', space=sflag, size = 0x4, scoped, tag = 'scoped memory for tpu_custom_call.1']
    #allocation7 [shape = 'u8[98304]{0}', space=vmem, size = 0x18000, scoped, tag = 'input window, operand 2, single buffered']
    #allocation8 [shape = 'u8[16384]{0}', space=vmem, size = 0x4000, scoped, tag = 'output window, operand 0, single buffered']
    %12 = vsyncpa [#allocation3], 0
    %13 = vsyncpa [#allocation6], 0
    %14 = vsyncpa [#allocation4], 0
    // Predicated region
    $region2: #{tpu_custom_call.1} parent=1 // pred_check
      _
    $region3: #{tpu_custom_call.1} parent=1 // pred_check_branch
      %16 = sbr.rel (0) target = $region5
    $region4: #{tpu_custom_call.1} parent=1 // pred_region
      %s18 = ssub.s32 512, 512
      %19 = vsyncadd [#allocation3], %s18
      %s20 = sshll.u32 [#allocation2], 4
      %s21 = int_to_ptr.vmem [resolvable:$true] %s20
      %26 = dma.hbm_to_vmem [thread:$0]  %s0, 512, %s21, [#allocation3], 128, 128, 8
    $region5: #{tpu_custom_call.1} parent=1 // pred_fallthru
      _
    // Predicated region
    $region6: #{tpu_custom_call.1} parent=1 // pred_check
      _
    $region7: #{tpu_custom_call.1} parent=1 // pred_check_branch
      %28 = sbr.rel (0) target = $region9
    $region8: #{tpu_custom_call.1} parent=1 // pred_region
      %s30 = ssub.s32 3072, 3072
      %31 = vsyncadd [#allocation6], %s30
      %s32 = sshll.u32 [#allocation5], 4
      %s33 = int_to_ptr.vmem [resolvable:$true] %s32
      %38 = dma.hbm_to_vmem [thread:$0]  %s1, 3072, %s33, [#allocation6], 128, 128, 8
    $region9: #{tpu_custom_call.1} parent=1 // pred_fallthru
      _
    // Predicated region
    $region10: #{tpu_custom_call.1} parent=1 // pred_check
      _
    $region11: #{tpu_custom_call.1} parent=1 // pred_check_branch
      %40 = sbr.rel (0) target = $region13
    $region12: #{tpu_custom_call.1} parent=1 // pred_region
      %s42 = ssub.s32 3072, 3072
      %43 = vsyncadd [#allocation6], %s42
      %s44 = sshll.u32 [#allocation7], 4
      %s45 = int_to_ptr.vmem [resolvable:$true] %s44
      %50 = dma.hbm_to_vmem [thread:$0]  %s2, 3072, %s45, [#allocation6], 128, 128, 8
    $region13: #{tpu_custom_call.1} parent=1 // pred_fallthru
      _
    // Predicated region
    $region14: #{tpu_custom_call.1} parent=1 // pred_check
      _
    $region15: #{tpu_custom_call.1} parent=1 // pred_check_branch
      %52 = sbr.rel (0) target = $region17
    $region16: #{tpu_custom_call.1} parent=1 // pred_region
      _
    $region17: #{tpu_custom_call.1} parent=1 // pred_fallthru
      _
    // Predicated region
    $region18: #{tpu_custom_call.1} parent=1 // pred_check
      _
    $region19: #{tpu_custom_call.1} parent=1 // pred_check_branch
      %54 = sbr.rel (0) target = $region21
    $region20: #{tpu_custom_call.1} parent=1 // pred_region
      _
    $region21: #{tpu_custom_call.1} parent=1 // pred_fallthru
      _
    // Predicated region
    $region22: #{tpu_custom_call.1} parent=1 // pred_check
      _
    $region23: #{tpu_custom_call.1} parent=1 // pred_check_branch
      %56 = sbr.rel (0) target = $region25
    $region24: #{tpu_custom_call.1} parent=1 // pred_region
      _
    $region25: #{tpu_custom_call.1} parent=1 // pred_fallthru
      _
    // Predicated region
    $region26: #{tpu_custom_call.1} parent=1 // pred_check
      _
    $region27: #{tpu_custom_call.1} parent=1 // pred_check_branch
      %58 = sbr.rel (0) target = $region29
    $region28: #{tpu_custom_call.1} parent=1 // pred_region
      _
    $region29: #{tpu_custom_call.1} parent=1 // pred_fallthru
      _
    // Predicated region
    $region30: #{tpu_custom_call.1} parent=1 // pred_check
      _
    $region31: #{tpu_custom_call.1} parent=1 // pred_check_branch
      %60 = sbr.rel (0) target = $region33
    $region32: #{tpu_custom_call.1} parent=1 // pred_region
      %61 = dma.done [#allocation3], 512
    $region33: #{tpu_custom_call.1} parent=1 // pred_fallthru
      _
    // Predicated region
    $region34: #{tpu_custom_call.1} parent=1 // pred_check
      _
    $region35: #{tpu_custom_call.1} parent=1 // pred_check_branch
      %63 = sbr.rel (0) target = $region37
    $region36: #{tpu_custom_call.1} parent=1 // pred_region
      %64 = dma.done [#allocation6], 3072
    $region37: #{tpu_custom_call.1} parent=1 // pred_fallthru
      _
    // Predicated region
    $region38: #{tpu_custom_call.1} parent=1 // pred_check
      _
    $region39: #{tpu_custom_call.1} parent=1 // pred_check_branch
      %66 = sbr.rel (0) target = $region41
    $region40: #{tpu_custom_call.1} parent=1 // pred_region
      %67 = dma.done [#allocation6], 3072
    $region41: #{tpu_custom_call.1} parent=1 // pred_fallthru
      _
    %v68 = vld [vmem:[#allocation2] sm:$0xff]
    %v69 = vld [vmem:[#allocation2 + $0x8] sm:$0xff]
    %v70 = vld [vmem:[#allocation2 + $0x10] sm:$0xff]
    %v71 = vld [vmem:[#allocation2 + $0x18] sm:$0xff]
    %vm76 = vcmask 1040384
    %v77 = vrot.slane %v68, 7
    %v78 = vrot.slane %v69, 7
    %v79 = vsel %vm76, %v77, %v78
    %v80 = vrot.slane %v70, 7
    %v81 = vsel %vm76, %v78, %v80
    %v82 = vrot.slane %v71, 7
    %v83 = vsel %vm76, %v80, %v82
    %v88 = vsel %vm76, 0.0, %v77
    %vm89 = vcmask 1046528
    %v90 = vrot.slane %v68, 1
    %v91 = vrot.slane %v69, 1
    %v92 = vsel %vm89, %v90, %v91
    %v93 = vrot.slane %v70, 1
    %v94 = vsel %vm89, %v91, %v93
    %v95 = vrot.slane %v71, 1
    %v96 = vsel %vm89, %v93, %v95
    %v101 = vsel %vm89, %v95, 0.0
    %v102 = vlaneseq
    %v103 = vshrl.u32 %v102, 7
    %v104 = vadd.s32 %v103, 8
    %v105 = vadd.s32 %v103, 16
    %v106 = vadd.s32 %v103, 24
    %vm107 = vcmp.lt.s32.totalorder %v103, 0
    %v108 = vsub.s32 0, %v103
    %v109 = vsel %vm107, %v108, %v103
    %v110 = vshrl.u32 %v109, 4
    %v111 = vand.u32 %v109, 15
    %v112 = vsub.s32 0, %v111
    %v113 = vsel %vm107, %v112, %v111
    %vm114 = vcmp.lt.s32.totalorder %v104, 0
    %v115 = vsub.s32 0, %v104
    %v116 = vsel %vm114, %v115, %v104
    %v117 = vshrl.u32 %v116, 4
    %v118 = vand.u32 %v116, 15
    %v119 = vsub.s32 0, %v118
    %v120 = vsel %vm114, %v119, %v118
    %vm121 = vcmp.lt.s32.totalorder %v105, 0
    %v122 = vsub.s32 0, %v105
    %v123 = vsel %vm121, %v122, %v105
    %v124 = vshrl.u32 %v123, 4
    %v125 = vand.u32 %v123, 15
    %v126 = vsub.s32 0, %v125
    %v127 = vsel %vm121, %v126, %v125
    %vm128 = vcmp.lt.s32.totalorder %v106, 0
    %v129 = vsub.s32 0, %v106
    %v130 = vsel %vm128, %v129, %v106
    %v131 = vshrl.u32 %v130, 4
    %v132 = vand.u32 %v130, 15
    %v133 = vsub.s32 0, %v132
    %v134 = vsel %vm128, %v133, %v132
    %vm135 = vcmp.ne.s32.totalorder %v113, 0
    %vm136 = vcmp.ne.s32.totalorder %v120, 0
    %vm137 = vcmp.ne.s32.totalorder %v127, 0
    %vm138 = vcmp.ne.s32.totalorder %v134, 0
    %vm139 = vcmp.lt.s32.totalorder %v113, 0
    %vm140 = vcmp.lt.s32.totalorder %v120, 0
    %vm141 = vcmp.lt.s32.totalorder %v127, 0
    %vm142 = vcmp.lt.s32.totalorder %v134, 0
    %vm143 = vmand %vm139, %vm135
    %vm144 = vmand %vm140, %vm136
    %vm145 = vmand %vm141, %vm137
    %vm146 = vmand %vm142, %vm138
    %v147 = vadd.s32 %v113, 16
    %v148 = vadd.s32 %v120, 16
    %v149 = vadd.s32 %v127, 16
    %v150 = vadd.s32 %v134, 16
    %v151 = vsel %vm143, %v147, %v113
    %v152 = vsel %vm144, %v148, %v120
    %v153 = vsel %vm145, %v149, %v127
    %v154 = vsel %vm146, %v150, %v134
    %vm155 = vcmp.eq.s32.totalorder %v151, 0
    %vm156 = vcmp.eq.s32.totalorder %v152, 0
    %vm157 = vcmp.eq.s32.totalorder %v153, 0
    %vm158 = vcmp.eq.s32.totalorder %v154, 0
    %v159 = vsel %vm155, 1, 0
    %v160 = vsel %vm156, 1, 0
    %v161 = vsel %vm157, 1, 0
    %v162 = vsel %vm158, 1, 0
    %vm163 = vcmp.eq.s32.totalorder %v159, 1
    %vm164 = vcmp.eq.s32.totalorder %v160, 1
    %vm165 = vcmp.eq.s32.totalorder %v161, 1
    %vm166 = vcmp.eq.s32.totalorder %v162, 1
    %v167 = vsel %vm163, 0.0, %v88
    %v168 = vsel %vm164, 0.0, %v79
    %v169 = vsel %vm165, 0.0, %v81
    %v170 = vsel %vm166, 0.0, %v83
    %vm171 = vcmp.eq.s32.totalorder %v151, 15
    %vm172 = vcmp.eq.s32.totalorder %v152, 15
    %vm173 = vcmp.eq.s32.totalorder %v153, 15
    %vm174 = vcmp.eq.s32.totalorder %v154, 15
    %v175 = vsel %vm171, 1, 0
    %v176 = vsel %vm172, 1, 0
    %v177 = vsel %vm173, 1, 0
    %v178 = vsel %vm174, 1, 0
    %vm179 = vcmp.eq.s32.totalorder %v175, 1
    %vm180 = vcmp.eq.s32.totalorder %v176, 1
    %vm181 = vcmp.eq.s32.totalorder %v177, 1
    %vm182 = vcmp.eq.s32.totalorder %v178, 1
    %v183 = vsel %vm179, 0.0, %v92
    %v184 = vsel %vm180, 0.0, %v94
    %v185 = vsel %vm181, 0.0, %v96
    %v186 = vsel %vm182, 0.0, %v101
    %v187 = vld [vmem:[#allocation5] sm:$0xff]
    %v188 = vld [vmem:[#allocation5 + $0x8] sm:$0xff]
    %v189 = vld [vmem:[#allocation5 + $0x10] sm:$0xff]
    %v190 = vld [vmem:[#allocation5 + $0x18] sm:$0xff]
    %v191 = vld [vmem:[#allocation5 + $0x20] sm:$0xff]
    %v192 = vld [vmem:[#allocation5 + $0x28] sm:$0xff]
    %v193 = vld [vmem:[#allocation5 + $0x30] sm:$0xff]
    %v194 = vld [vmem:[#allocation5 + $0x38] sm:$0xff]
    %s195 = scalar_lea.vmem [#allocation5], 64
    %v196 = vld [vmem:[%s195] sm:$0xff]
    %v197 = vld [vmem:[%s195 + $0x8] sm:$0xff]
    %v198 = vld [vmem:[%s195 + $0x10] sm:$0xff]
    %v199 = vld [vmem:[%s195 + $0x18] sm:$0xff]
    %v200 = vld [vmem:[%s195 + $0x20] sm:$0xff]
    %v201 = vld [vmem:[%s195 + $0x28] sm:$0xff]
    %v202 = vld [vmem:[%s195 + $0x30] sm:$0xff]
    %v203 = vld [vmem:[%s195 + $0x38] sm:$0xff]
    %vm204 = vcmask 523264
    %v205 = vsel %vm204, %v68, 0
    %v207 = vsel %vm204, %v69, 0
    %v209 = vsel %vm204, %v70, 0
    %v211 = vsel %vm204, %v71, 0
    %213 = vmatprep.subr.mxu0 0.0
    %214 = vmatpush1.msra.mxu0 0.0
    %215 = vmatprep.subr.mxu0 0.0
    %216 = vmatpush1.msra.mxu0 0.0
    %217 = vmatprep.subr.mxu0 0.0
    %218 = vmatpush1.msra.mxu0 0.0
    %219 = vmatprep.subr.mxu0 0.0
    %220 = vmatpush1.msra.mxu0 0.0
    %221 = vmatprep.subr.mxu0 0.0
    %222 = vmatpush1.msra.mxu0 0.0
    %223 = vmatprep.subr.mxu0 0.0
    %224 = vmatpush1.msra.mxu0 0.0
    %225 = vmatprep.subr.mxu0 0.0
    %226 = vmatpush1.msra.mxu0 0.0
    %227 = vmatprep.subr.mxu0 0.0
    %228 = vmatpush1.msra.mxu0 0.0
    %229 = vmatprep.subr.mxu0 0.0
    %230 = vmatpush1.msra.mxu0 %v203
    %231 = vmatprep.subr.mxu0 0.0
    %232 = vmatpush1.msra.mxu0 %v202
    %233 = vmatprep.subr.mxu0 0.0
    %234 = vmatpush1.msra.mxu0 %v201
    %235 = vmatprep.subr.mxu0 0.0
    %236 = vmatpush1.msra.mxu0 %v200
    %237 = vmatprep.subr.mxu0 0.0
    %238 = vmatpush1.msra.mxu0 %v199
    %239 = vmatprep.subr.mxu0 0.0
    %240 = vmatpush1.msra.mxu0 %v198
    %241 = vmatprep.subr.mxu0 0.0
    %242 = vmatpush1.msra.mxu0 %v197
    %243 = vmatprep.subr.mxu0 0.0
    %244 = vmatpush1.msra.mxu0 %v196
    %245 = vmatprep.subr.mxu0 0.0
    %246 = vmatpush2.msra.mxu0 0.0
    %247 = vmatprep.subr.mxu0 0.0
    %248 = vmatpush2.msra.mxu0 0.0
    %249 = vmatprep.subr.mxu0 0.0
    %250 = vmatpush2.msra.mxu0 0.0
    %251 = vmatprep.subr.mxu0 0.0
    %252 = vmatpush2.msra.mxu0 0.0
    %253 = vmatprep.subr.mxu0 0.0
    %254 = vmatpush2.msra.mxu0 0.0
    %255 = vmatprep.subr.mxu0 0.0
    %256 = vmatpush2.msra.mxu0 0.0
    %257 = vmatprep.subr.mxu0 0.0
    %258 = vmatpush2.msra.mxu0 0.0
    %259 = vmatprep.subr.mxu0 0.0
    %260 = vmatpush2.msra.mxu0 0.0
    %261 = vmatprep.subr.mxu0 0.0
    %262 = vmatpush2.msra.mxu0 0.0
    %263 = vmatprep.subr.mxu0 0.0
    %264 = vmatpush2.msra.mxu0 0.0
    %265 = vmatprep.subr.mxu0 0.0
    %266 = vmatpush2.msra.mxu0 0.0
    %267 = vmatprep.subr.mxu0 0.0
    %268 = vmatpush2.msra.mxu0 0.0
    %269 = vmatprep.subr.mxu0 0.0
    %270 = vmatpush2.msra.mxu0 0.0
    %271 = vmatprep.subr.mxu0 0.0
    %272 = vmatpush2.msra.mxu0 0.0
    %273 = vmatprep.subr.mxu0 0.0
    %274 = vmatpush2.msra.mxu0 0.0
    %275 = vmatprep.subr.mxu0 0.0
    %276 = vmatpush2.msra.mxu0 0.0
    %277 = vmatprep.mubr.f32.mxu0 0.0
    %278 = vmatmul.mubr.f32.gmra.mxu0 %v205
    %v279 = vpop.f32.mrf.mxu0
    %v280 = vadd.f32 0.0, %v279
    %v281 = vpop.f32.mrf.mxu0
    %282 = vmatprep.mubr.f32.mxu0 0.0
    %283 = vmatmul.mubr.f32.gmra.mxu0 %v207
    %v284 = vpop.f32.mrf.mxu0
    %v285 = vadd.f32 0.0, %v284
    %v286 = vpop.f32.mrf.mxu0
    %287 = vmatprep.mubr.f32.mxu0 0.0
    %288 = vmatmul.mubr.f32.gmra.mxu0 %v209
    %v289 = vpop.f32.mrf.mxu0
    %v290 = vadd.f32 0.0, %v289
    %v291 = vpop.f32.mrf.mxu0
    %292 = vmatprep.mubr.f32.mxu0 0.0
    %293 = vmatmul.mubr.f32.gmra.mxu0 %v211
    %v294 = vpop.f32.mrf.mxu0
    %v295 = vadd.f32 0.0, %v294
    %v296 = vpop.f32.mrf.mxu0
    %297 = vdwg.mxu0
    %v299 = vsel %vm204, %v167, 0
    %v302 = vsel %vm204, %v168, 0
    %v305 = vsel %vm204, %v169, 0
    %v308 = vsel %vm204, %v170, 0
    %310 = vmatprep.subr.mxu0 0.0
    %311 = vmatpush1.msra.mxu0 0.0
    %312 = vmatprep.subr.mxu0 0.0
    %313 = vmatpush1.msra.mxu0 0.0
    %314 = vmatprep.subr.mxu0 0.0
    %315 = vmatpush1.msra.mxu0 0.0
    %316 = vmatprep.subr.mxu0 0.0
    %317 = vmatpush1.msra.mxu0 0.0
    %318 = vmatprep.subr.mxu0 0.0
    %319 = vmatpush1.msra.mxu0 0.0
    %320 = vmatprep.subr.mxu0 0.0
    %321 = vmatpush1.msra.mxu0 0.0
    %322 = vmatprep.subr.mxu0 0.0
    %323 = vmatpush1.msra.mxu0 0.0
    %324 = vmatprep.subr.mxu0 0.0
    %325 = vmatpush1.msra.mxu0 0.0
    %326 = vmatprep.subr.mxu0 0.0
    %327 = vmatpush1.msra.mxu0 %v194
    %328 = vmatprep.subr.mxu0 0.0
    %329 = vmatpush1.msra.mxu0 %v193
    %330 = vmatprep.subr.mxu0 0.0
    %331 = vmatpush1.msra.mxu0 %v192
    %332 = vmatprep.subr.mxu0 0.0
    %333 = vmatpush1.msra.mxu0 %v191
    %334 = vmatprep.subr.mxu0 0.0
    %335 = vmatpush1.msra.mxu0 %v190
    %336 = vmatprep.subr.mxu0 0.0
    %337 = vmatpush1.msra.mxu0 %v189
    %338 = vmatprep.subr.mxu0 0.0
    %339 = vmatpush1.msra.mxu0 %v188
    %340 = vmatprep.subr.mxu0 0.0
    %341 = vmatpush1.msra.mxu0 %v187
    %342 = vmatprep.subr.mxu0 0.0
    %343 = vmatpush2.msra.mxu0 0.0
    %344 = vmatprep.subr.mxu0 0.0
    %345 = vmatpush2.msra.mxu0 0.0
    %346 = vmatprep.subr.mxu0 0.0
    %347 = vmatpush2.msra.mxu0 0.0
    %348 = vmatprep.subr.mxu0 0.0
    %349 = vmatpush2.msra.mxu0 0.0
    %350 = vmatprep.subr.mxu0 0.0
    %351 = vmatpush2.msra.mxu0 0.0
    %352 = vmatprep.subr.mxu0 0.0
    %353 = vmatpush2.msra.mxu0 0.0
    %354 = vmatprep.subr.mxu0 0.0
    %355 = vmatpush2.msra.mxu0 0.0
    %356 = vmatprep.subr.mxu0 0.0
    %357 = vmatpush2.msra.mxu0 0.0
    %358 = vmatprep.subr.mxu0 0.0
    %359 = vmatpush2.msra.mxu0 0.0
    %360 = vmatprep.subr.mxu0 0.0
    %361 = vmatpush2.msra.mxu0 0.0
    %362 = vmatprep.subr.mxu0 0.0
    %363 = vmatpush2.msra.mxu0 0.0
    %364 = vmatprep.subr.mxu0 0.0
    %365 = vmatpush2.msra.mxu0 0.0
    %366 = vmatprep.subr.mxu0 0.0
    %367 = vmatpush2.msra.mxu0 0.0
    %368 = vmatprep.subr.mxu0 0.0
    %369 = vmatpush2.msra.mxu0 0.0
    %370 = vmatprep.subr.mxu0 0.0
    %371 = vmatpush2.msra.mxu0 0.0
    %372 = vmatprep.subr.mxu0 0.0
    %373 = vmatpush2.msra.mxu0 0.0
    %374 = vmatprep.mubr.f32.mxu0 0.0
    %375 = vmatmul.mubr.f32.gmra.mxu0 %v299
    %v376 = vpop.f32.mrf.mxu0
    %v377 = vadd.f32 %v280, %v376
    %v378 = vpop.f32.mrf.mxu0
    %379 = vmatprep.mubr.f32.mxu0 0.0
    %380 = vmatmul.mubr.f32.gmra.mxu0 %v302
    %v381 = vpop.f32.mrf.mxu0
    %v382 = vadd.f32 %v285, %v381
    %v383 = vpop.f32.mrf.mxu0
    %384 = vmatprep.mubr.f32.mxu0 0.0
    %385 = vmatmul.mubr.f32.gmra.mxu0 %v305
    %v386 = vpop.f32.mrf.mxu0
    %v387 = vadd.f32 %v290, %v386
    %v388 = vpop.f32.mrf.mxu0
    %389 = vmatprep.mubr.f32.mxu0 0.0
    %390 = vmatmul.mubr.f32.gmra.mxu0 %v308
    %v391 = vpop.f32.mrf.mxu0
    %v392 = vadd.f32 %v295, %v391
    %v393 = vpop.f32.mrf.mxu0
    %394 = vdwg.mxu0
    %s395 = scalar_lea.vmem [#allocation5], 128
    %v396 = vld [vmem:[%s395] sm:$0xff]
    %v397 = vld [vmem:[%s395 + $0x8] sm:$0xff]
    %v398 = vld [vmem:[%s395 + $0x10] sm:$0xff]
    %v399 = vld [vmem:[%s395 + $0x18] sm:$0xff]
    %v400 = vld [vmem:[%s395 + $0x20] sm:$0xff]
    %v401 = vld [vmem:[%s395 + $0x28] sm:$0xff]
    %v402 = vld [vmem:[%s395 + $0x30] sm:$0xff]
    %v403 = vld [vmem:[%s395 + $0x38] sm:$0xff]
    %v405 = vsel %vm204, %v183, 0
    %v408 = vsel %vm204, %v184, 0
    %v411 = vsel %vm204, %v185, 0
    %v414 = vsel %vm204, %v186, 0
    %416 = vmatprep.subr.mxu0 0.0
    %417 = vmatpush1.msra.mxu0 0.0
    %418 = vmatprep.subr.mxu0 0.0
    %419 = vmatpush1.msra.mxu0 0.0
    %420 = vmatprep.subr.mxu0 0.0
    %421 = vmatpush1.msra.mxu0 0.0
    %422 = vmatprep.subr.mxu0 0.0
    %423 = vmatpush1.msra.mxu0 0.0
    %424 = vmatprep.subr.mxu0 0.0
    %425 = vmatpush1.msra.mxu0 0.0
    %426 = vmatprep.subr.mxu0 0.0
    %427 = vmatpush1.msra.mxu0 0.0
    %428 = vmatprep.subr.mxu0 0.0
    %429 = vmatpush1.msra.mxu0 0.0
    %430 = vmatprep.subr.mxu0 0.0
    %431 = vmatpush1.msra.mxu0 0.0
    %432 = vmatprep.subr.mxu0 0.0
    %433 = vmatpush1.msra.mxu0 %v403
    %434 = vmatprep.subr.mxu0 0.0
    %435 = vmatpush1.msra.mxu0 %v402
    %436 = vmatprep.subr.mxu0 0.0
    %437 = vmatpush1.msra.mxu0 %v401
    %438 = vmatprep.subr.mxu0 0.0
    %439 = vmatpush1.msra.mxu0 %v400
    %440 = vmatprep.subr.mxu0 0.0
    %441 = vmatpush1.msra.mxu0 %v399
    %442 = vmatprep.subr.mxu0 0.0
    %443 = vmatpush1.msra.mxu0 %v398
    %444 = vmatprep.subr.mxu0 0.0
    %445 = vmatpush1.msra.mxu0 %v397
    %446 = vmatprep.subr.mxu0 0.0
    %447 = vmatpush1.msra.mxu0 %v396
    %448 = vmatprep.subr.mxu0 0.0
    %449 = vmatpush2.msra.mxu0 0.0
    %450 = vmatprep.subr.mxu0 0.0
    %451 = vmatpush2.msra.mxu0 0.0
    %452 = vmatprep.subr.mxu0 0.0
    %453 = vmatpush2.msra.mxu0 0.0
    %454 = vmatprep.subr.mxu0 0.0
    %455 = vmatpush2.msra.mxu0 0.0
    %456 = vmatprep.subr.mxu0 0.0
    %457 = vmatpush2.msra.mxu0 0.0
    %458 = vmatprep.subr.mxu0 0.0
    %459 = vmatpush2.msra.mxu0 0.0
    %460 = vmatprep.subr.mxu0 0.0
    %461 = vmatpush2.msra.mxu0 0.0
    %462 = vmatprep.subr.mxu0 0.0
    %463 = vmatpush2.msra.mxu0 0.0
    %464 = vmatprep.subr.mxu0 0.0
    %465 = vmatpush2.msra.mxu0 0.0
    %466 = vmatprep.subr.mxu0 0.0
    %467 = vmatpush2.msra.mxu0 0.0
    %468 = vmatprep.subr.mxu0 0.0
    %469 = vmatpush2.msra.mxu0 0.0
    %470 = vmatprep.subr.mxu0 0.0
    %471 = vmatpush2.msra.mxu0 0.0
    %472 = vmatprep.subr.mxu0 0.0
    %473 = vmatpush2.msra.mxu0 0.0
    %474 = vmatprep.subr.mxu0 0.0
    %475 = vmatpush2.msra.mxu0 0.0
    %476 = vmatprep.subr.mxu0 0.0
    %477 = vmatpush2.msra.mxu0 0.0
    %478 = vmatprep.subr.mxu0 0.0
    %479 = vmatpush2.msra.mxu0 0.0
    %480 = vmatprep.mubr.f32.mxu0 0.0
    %481 = vmatmul.mubr.f32.gmra.mxu0 %v405
    %v482 = vpop.f32.mrf.mxu0
    %v483 = vadd.f32 0.0, %v482
    %v484 = vpop.f32.mrf.mxu0
    %485 = vmatprep.mubr.f32.mxu0 0.0
    %486 = vmatmul.mubr.f32.gmra.mxu0 %v408
    %v487 = vpop.f32.mrf.mxu0
    %v488 = vadd.f32 0.0, %v487
    %v489 = vpop.f32.mrf.mxu0
    %490 = vmatprep.mubr.f32.mxu0 0.0
    %491 = vmatmul.mubr.f32.gmra.mxu0 %v411
    %v492 = vpop.f32.mrf.mxu0
    %v493 = vadd.f32 0.0, %v492
    %v494 = vpop.f32.mrf.mxu0
    %495 = vmatprep.mubr.f32.mxu0 0.0
    %496 = vmatmul.mubr.f32.gmra.mxu0 %v414
    %v497 = vpop.f32.mrf.mxu0
    %v498 = vadd.f32 0.0, %v497
    %v499 = vpop.f32.mrf.mxu0
    %500 = vdwg.mxu0
    %v501 = vadd.f32 %v377, %v483
    %v502 = vadd.f32 %v382, %v488
    %v503 = vadd.f32 %v387, %v493
    %v504 = vadd.f32 %v392, %v498
    %v505 = vld [vmem:[%s3] sm:$0x1]
    %v507 = vlaneseq
    %v508 = vshrl.u32 %v507, 7
    %v509 = vsub.s32 0, %v508
    %v510 = vrot.slane %v505, %v509
    %v512 = vmul.f32 %v501, %v510
    %v513 = vmul.f32 %v502, %v510
    %v514 = vmul.f32 %v503, %v510
    %v515 = vmul.f32 %v504, %v510
    %v516 = vld [vmem:[%s4] sm:$0x1]
    %v518 = vlaneseq
    %v519 = vshrl.u32 %v518, 7
    %v520 = vsub.s32 0, %v519
    %v521 = vrot.slane %v516, %v520
    %v523 = vadd.f32 %v512, %v521
    %v524 = vadd.f32 %v513, %v521
    %v525 = vadd.f32 %v514, %v521
    %v526 = vadd.f32 %v515, %v521
    %vm527 = vcmp.gt.f32.partialorder %v523, 0.0
    %vm528 = vcmp.gt.f32.partialorder %v524, 0.0
    %vm529 = vcmp.gt.f32.partialorder %v525, 0.0
    %vm530 = vcmp.gt.f32.partialorder %v526, 0.0
    %v531 = vmul.f32 %v523, 0.2
    %v532 = vmul.f32 %v524, 0.2
    %v533 = vmul.f32 %v525, 0.2
    %v534 = vmul.f32 %v526, 0.2
    %v535 = vsel %vm527, %v523, %v531
    %v536 = vsel %vm528, %v524, %v532
    %v537 = vsel %vm529, %v525, %v533
    %v538 = vsel %vm530, %v526, %v534
    %v543 = vrot.slane %v535, 7
    %v544 = vrot.slane %v536, 7
    %v545 = vsel %vm76, %v543, %v544
    %v546 = vrot.slane %v537, 7
    %v547 = vsel %vm76, %v544, %v546
    %v548 = vrot.slane %v538, 7
    %v549 = vsel %vm76, %v546, %v548
    %v554 = vsel %vm76, 0.0, %v543
    %v555 = vrot.slane %v535, 1
    %v556 = vrot.slane %v536, 1
    %v557 = vsel %vm89, %v555, %v556
    %v558 = vrot.slane %v537, 1
    %v559 = vsel %vm89, %v556, %v558
    %v560 = vrot.slane %v538, 1
    %v561 = vsel %vm89, %v558, %v560
    %v566 = vsel %vm89, %v560, 0.0
    %v567 = vsel %vm163, 0.0, %v554
    %v568 = vsel %vm164, 0.0, %v545
    %v569 = vsel %vm165, 0.0, %v547
    %v570 = vsel %vm166, 0.0, %v549
    %v571 = vsel %vm179, 0.0, %v557
    %v572 = vsel %vm180, 0.0, %v559
    %v573 = vsel %vm181, 0.0, %v561
    %v574 = vsel %vm182, 0.0, %v566
    %v575 = vld [vmem:[#allocation7] sm:$0xff]
    %v576 = vld [vmem:[#allocation7 + $0x8] sm:$0xff]
    %v577 = vld [vmem:[#allocation7 + $0x10] sm:$0xff]
    %v578 = vld [vmem:[#allocation7 + $0x18] sm:$0xff]
    %v579 = vld [vmem:[#allocation7 + $0x20] sm:$0xff]
    %v580 = vld [vmem:[#allocation7 + $0x28] sm:$0xff]
    %v581 = vld [vmem:[#allocation7 + $0x30] sm:$0xff]
    %v582 = vld [vmem:[#allocation7 + $0x38] sm:$0xff]
    %s583 = scalar_lea.vmem [#allocation7], 64
    %v584 = vld [vmem:[%s583] sm:$0xff]
    %v585 = vld [vmem:[%s583 + $0x8] sm:$0xff]
    %v586 = vld [vmem:[%s583 + $0x10] sm:$0xff]
    %v587 = vld [vmem:[%s583 + $0x18] sm:$0xff]
    %v588 = vld [vmem:[%s583 + $0x20] sm:$0xff]
    %v589 = vld [vmem:[%s583 + $0x28] sm:$0xff]
    %v590 = vld [vmem:[%s583 + $0x30] sm:$0xff]
    %v591 = vld [vmem:[%s583 + $0x38] sm:$0xff]
    %v592 = vsel %vm204, %v535, 0
    %v594 = vsel %vm204, %v536, 0
    %v596 = vsel %vm204, %v537, 0
    %v598 = vsel %vm204, %v538, 0
    %600 = vmatprep.subr.mxu0 0.0
    %601 = vmatpush1.msra.mxu0 0.0
    %602 = vmatprep.subr.mxu0 0.0
    %603 = vmatpush1.msra.mxu0 0.0
    %604 = vmatprep.subr.mxu0 0.0
    %605 = vmatpush1.msra.mxu0 0.0
    %606 = vmatprep.subr.mxu0 0.0
    %607 = vmatpush1.msra.mxu0 0.0
    %608 = vmatprep.subr.mxu0 0.0
    %609 = vmatpush1.msra.mxu0 0.0
    %610 = vmatprep.subr.mxu0 0.0
    %611 = vmatpush1.msra.mxu0 0.0
    %612 = vmatprep.subr.mxu0 0.0
    %613 = vmatpush1.msra.mxu0 0.0
    %614 = vmatprep.subr.mxu0 0.0
    %615 = vmatpush1.msra.mxu0 0.0
    %616 = vmatprep.subr.mxu0 0.0
    %617 = vmatpush1.msra.mxu0 %v591
    %618 = vmatprep.subr.mxu0 0.0
    %619 = vmatpush1.msra.mxu0 %v590
    %620 = vmatprep.subr.mxu0 0.0
    %621 = vmatpush1.msra.mxu0 %v589
    %622 = vmatprep.subr.mxu0 0.0
    %623 = vmatpush1.msra.mxu0 %v588
    %624 = vmatprep.subr.mxu0 0.0
    %625 = vmatpush1.msra.mxu0 %v587
    %626 = vmatprep.subr.mxu0 0.0
    %627 = vmatpush1.msra.mxu0 %v586
    %628 = vmatprep.subr.mxu0 0.0
    %629 = vmatpush1.msra.mxu0 %v585
    %630 = vmatprep.subr.mxu0 0.0
    %631 = vmatpush1.msra.mxu0 %v584
    %632 = vmatprep.subr.mxu0 0.0
    %633 = vmatpush2.msra.mxu0 0.0
    %634 = vmatprep.subr.mxu0 0.0
    %635 = vmatpush2.msra.mxu0 0.0
    %636 = vmatprep.subr.mxu0 0.0
    %637 = vmatpush2.msra.mxu0 0.0
    %638 = vmatprep.subr.mxu0 0.0
    %639 = vmatpush2.msra.mxu0 0.0
    %640 = vmatprep.subr.mxu0 0.0
    %641 = vmatpush2.msra.mxu0 0.0
    %642 = vmatprep.subr.mxu0 0.0
    %643 = vmatpush2.msra.mxu0 0.0
    %644 = vmatprep.subr.mxu0 0.0
    %645 = vmatpush2.msra.mxu0 0.0
    %646 = vmatprep.subr.mxu0 0.0
    %647 = vmatpush2.msra.mxu0 0.0
    %648 = vmatprep.subr.mxu0 0.0
    %649 = vmatpush2.msra.mxu0 0.0
    %650 = vmatprep.subr.mxu0 0.0
    %651 = vmatpush2.msra.mxu0 0.0
    %652 = vmatprep.subr.mxu0 0.0
    %653 = vmatpush2.msra.mxu0 0.0
    %654 = vmatprep.subr.mxu0 0.0
    %655 = vmatpush2.msra.mxu0 0.0
    %656 = vmatprep.subr.mxu0 0.0
    %657 = vmatpush2.msra.mxu0 0.0
    %658 = vmatprep.subr.mxu0 0.0
    %659 = vmatpush2.msra.mxu0 0.0
    %660 = vmatprep.subr.mxu0 0.0
    %661 = vmatpush2.msra.mxu0 0.0
    %662 = vmatprep.subr.mxu0 0.0
    %663 = vmatpush2.msra.mxu0 0.0
    %664 = vmatprep.mubr.f32.mxu0 0.0
    %665 = vmatmul.mubr.f32.gmra.mxu0 %v592
    %v666 = vpop.f32.mrf.mxu0
    %v667 = vadd.f32 0.0, %v666
    %v668 = vpop.f32.mrf.mxu0
    %669 = vmatprep.mubr.f32.mxu0 0.0
    %670 = vmatmul.mubr.f32.gmra.mxu0 %v594
    %v671 = vpop.f32.mrf.mxu0
    %v672 = vadd.f32 0.0, %v671
    %v673 = vpop.f32.mrf.mxu0
    %674 = vmatprep.mubr.f32.mxu0 0.0
    %675 = vmatmul.mubr.f32.gmra.mxu0 %v596
    %v676 = vpop.f32.mrf.mxu0
    %v677 = vadd.f32 0.0, %v676
    %v678 = vpop.f32.mrf.mxu0
    %679 = vmatprep.mubr.f32.mxu0 0.0
    %680 = vmatmul.mubr.f32.gmra.mxu0 %v598
    %v681 = vpop.f32.mrf.mxu0
    %v682 = vadd.f32 0.0, %v681
    %v683 = vpop.f32.mrf.mxu0
    %684 = vdwg.mxu0
    %v686 = vsel %vm204, %v567, 0
    %v689 = vsel %vm204, %v568, 0
    %v692 = vsel %vm204, %v569, 0
    %v695 = vsel %vm204, %v570, 0
    %697 = vmatprep.subr.mxu0 0.0
    %698 = vmatpush1.msra.mxu0 0.0
    %699 = vmatprep.subr.mxu0 0.0
    %700 = vmatpush1.msra.mxu0 0.0
    %701 = vmatprep.subr.mxu0 0.0
    %702 = vmatpush1.msra.mxu0 0.0
    %703 = vmatprep.subr.mxu0 0.0
    %704 = vmatpush1.msra.mxu0 0.0
    %705 = vmatprep.subr.mxu0 0.0
    %706 = vmatpush1.msra.mxu0 0.0
    %707 = vmatprep.subr.mxu0 0.0
    %708 = vmatpush1.msra.mxu0 0.0
    %709 = vmatprep.subr.mxu0 0.0
    %710 = vmatpush1.msra.mxu0 0.0
    %711 = vmatprep.subr.mxu0 0.0
    %712 = vmatpush1.msra.mxu0 0.0
    %713 = vmatprep.subr.mxu0 0.0
    %714 = vmatpush1.msra.mxu0 %v582
    %715 = vmatprep.subr.mxu0 0.0
    %716 = vmatpush1.msra.mxu0 %v581
    %717 = vmatprep.subr.mxu0 0.0
    %718 = vmatpush1.msra.mxu0 %v580
    %719 = vmatprep.subr.mxu0 0.0
    %720 = vmatpush1.msra.mxu0 %v579
    %721 = vmatprep.subr.mxu0 0.0
    %722 = vmatpush1.msra.mxu0 %v578
    %723 = vmatprep.subr.mxu0 0.0
    %724 = vmatpush1.msra.mxu0 %v577
    %725 = vmatprep.subr.mxu0 0.0
    %726 = vmatpush1.msra.mxu0 %v576
    %727 = vmatprep.subr.mxu0 0.0
    %728 = vmatpush1.msra.mxu0 %v575
    %729 = vmatprep.subr.mxu0 0.0
    %730 = vmatpush2.msra.mxu0 0.0
    %731 = vmatprep.subr.mxu0 0.0
    %732 = vmatpush2.msra.mxu0 0.0
    %733 = vmatprep.subr.mxu0 0.0
    %734 = vmatpush2.msra.mxu0 0.0
    %735 = vmatprep.subr.mxu0 0.0
    %736 = vmatpush2.msra.mxu0 0.0
    %737 = vmatprep.subr.mxu0 0.0
    %738 = vmatpush2.msra.mxu0 0.0
    %739 = vmatprep.subr.mxu0 0.0
    %740 = vmatpush2.msra.mxu0 0.0
    %741 = vmatprep.subr.mxu0 0.0
    %742 = vmatpush2.msra.mxu0 0.0
    %743 = vmatprep.subr.mxu0 0.0
    %744 = vmatpush2.msra.mxu0 0.0
    %745 = vmatprep.subr.mxu0 0.0
    %746 = vmatpush2.msra.mxu0 0.0
    %747 = vmatprep.subr.mxu0 0.0
    %748 = vmatpush2.msra.mxu0 0.0
    %749 = vmatprep.subr.mxu0 0.0
    %750 = vmatpush2.msra.mxu0 0.0
    %751 = vmatprep.subr.mxu0 0.0
    %752 = vmatpush2.msra.mxu0 0.0
    %753 = vmatprep.subr.mxu0 0.0
    %754 = vmatpush2.msra.mxu0 0.0
    %755 = vmatprep.subr.mxu0 0.0
    %756 = vmatpush2.msra.mxu0 0.0
    %757 = vmatprep.subr.mxu0 0.0
    %758 = vmatpush2.msra.mxu0 0.0
    %759 = vmatprep.subr.mxu0 0.0
    %760 = vmatpush2.msra.mxu0 0.0
    %761 = vmatprep.mubr.f32.mxu0 0.0
    %762 = vmatmul.mubr.f32.gmra.mxu0 %v686
    %v763 = vpop.f32.mrf.mxu0
    %v764 = vadd.f32 %v667, %v763
    %v765 = vpop.f32.mrf.mxu0
    %766 = vmatprep.mubr.f32.mxu0 0.0
    %767 = vmatmul.mubr.f32.gmra.mxu0 %v689
    %v768 = vpop.f32.mrf.mxu0
    %v769 = vadd.f32 %v672, %v768
    %v770 = vpop.f32.mrf.mxu0
    %771 = vmatprep.mubr.f32.mxu0 0.0
    %772 = vmatmul.mubr.f32.gmra.mxu0 %v692
    %v773 = vpop.f32.mrf.mxu0
    %v774 = vadd.f32 %v677, %v773
    %v775 = vpop.f32.mrf.mxu0
    %776 = vmatprep.mubr.f32.mxu0 0.0
    %777 = vmatmul.mubr.f32.gmra.mxu0 %v695
    %v778 = vpop.f32.mrf.mxu0
    %v779 = vadd.f32 %v682, %v778
    %v780 = vpop.f32.mrf.mxu0
    %781 = vdwg.mxu0
    %s782 = scalar_lea.vmem [#allocation7], 128
    %v783 = vld [vmem:[%s782] sm:$0xff]
    %v784 = vld [vmem:[%s782 + $0x8] sm:$0xff]
    %v785 = vld [vmem:[%s782 + $0x10] sm:$0xff]
    %v786 = vld [vmem:[%s782 + $0x18] sm:$0xff]
    %v787 = vld [vmem:[%s782 + $0x20] sm:$0xff]
    %v788 = vld [vmem:[%s782 + $0x28] sm:$0xff]
    %v789 = vld [vmem:[%s782 + $0x30] sm:$0xff]
    %v790 = vld [vmem:[%s782 + $0x38] sm:$0xff]
    %v792 = vsel %vm204, %v571, 0
    %v795 = vsel %vm204, %v572, 0
    %v798 = vsel %vm204, %v573, 0
    %v801 = vsel %vm204, %v574, 0
    %803 = vmatprep.subr.mxu0 0.0
    %804 = vmatpush1.msra.mxu0 0.0
    %805 = vmatprep.subr.mxu0 0.0
    %806 = vmatpush1.msra.mxu0 0.0
    %807 = vmatprep.subr.mxu0 0.0
    %808 = vmatpush1.msra.mxu0 0.0
    %809 = vmatprep.subr.mxu0 0.0
    %810 = vmatpush1.msra.mxu0 0.0
    %811 = vmatprep.subr.mxu0 0.0
    %812 = vmatpush1.msra.mxu0 0.0
    %813 = vmatprep.subr.mxu0 0.0
    %814 = vmatpush1.msra.mxu0 0.0
    %815 = vmatprep.subr.mxu0 0.0
    %816 = vmatpush1.msra.mxu0 0.0
    %817 = vmatprep.subr.mxu0 0.0
    %818 = vmatpush1.msra.mxu0 0.0
    %819 = vmatprep.subr.mxu0 0.0
    %820 = vmatpush1.msra.mxu0 %v790
    %821 = vmatprep.subr.mxu0 0.0
    %822 = vmatpush1.msra.mxu0 %v789
    %823 = vmatprep.subr.mxu0 0.0
    %824 = vmatpush1.msra.mxu0 %v788
    %825 = vmatprep.subr.mxu0 0.0
    %826 = vmatpush1.msra.mxu0 %v787
    %827 = vmatprep.subr.mxu0 0.0
    %828 = vmatpush1.msra.mxu0 %v786
    %829 = vmatprep.subr.mxu0 0.0
    %830 = vmatpush1.msra.mxu0 %v785
    %831 = vmatprep.subr.mxu0 0.0
    %832 = vmatpush1.msra.mxu0 %v784
    %833 = vmatprep.subr.mxu0 0.0
    %834 = vmatpush1.msra.mxu0 %v783
    %835 = vmatprep.subr.mxu0 0.0
    %836 = vmatpush2.msra.mxu0 0.0
    %837 = vmatprep.subr.mxu0 0.0
    %838 = vmatpush2.msra.mxu0 0.0
    %839 = vmatprep.subr.mxu0 0.0
    %840 = vmatpush2.msra.mxu0 0.0
    %841 = vmatprep.subr.mxu0 0.0
    %842 = vmatpush2.msra.mxu0 0.0
    %843 = vmatprep.subr.mxu0 0.0
    %844 = vmatpush2.msra.mxu0 0.0
    %845 = vmatprep.subr.mxu0 0.0
    %846 = vmatpush2.msra.mxu0 0.0
    %847 = vmatprep.subr.mxu0 0.0
    %848 = vmatpush2.msra.mxu0 0.0
    %849 = vmatprep.subr.mxu0 0.0
    %850 = vmatpush2.msra.mxu0 0.0
    %851 = vmatprep.subr.mxu0 0.0
    %852 = vmatpush2.msra.mxu0 0.0
    %853 = vmatprep.subr.mxu0 0.0
    %854 = vmatpush2.msra.mxu0 0.0
    %855 = vmatprep.subr.mxu0 0.0
    %856 = vmatpush2.msra.mxu0 0.0
    %857 = vmatprep.subr.mxu0 0.0
    %858 = vmatpush2.msra.mxu0 0.0
    %859 = vmatprep.subr.mxu0 0.0
    %860 = vmatpush2.msra.mxu0 0.0
    %861 = vmatprep.subr.mxu0 0.0
    %862 = vmatpush2.msra.mxu0 0.0
    %863 = vmatprep.subr.mxu0 0.0
    %864 = vmatpush2.msra.mxu0 0.0
    %865 = vmatprep.subr.mxu0 0.0
    %866 = vmatpush2.msra.mxu0 0.0
    %867 = vmatprep.mubr.f32.mxu0 0.0
    %868 = vmatmul.mubr.f32.gmra.mxu0 %v792
    %v869 = vpop.f32.mrf.mxu0
    %v870 = vadd.f32 0.0, %v869
    %v871 = vpop.f32.mrf.mxu0
    %872 = vmatprep.mubr.f32.mxu0 0.0
    %873 = vmatmul.mubr.f32.gmra.mxu0 %v795
    %v874 = vpop.f32.mrf.mxu0
    %v875 = vadd.f32 0.0, %v874
    %v876 = vpop.f32.mrf.mxu0
    %877 = vmatprep.mubr.f32.mxu0 0.0
    %878 = vmatmul.mubr.f32.gmra.mxu0 %v798
    %v879 = vpop.f32.mrf.mxu0
    %v880 = vadd.f32 0.0, %v879
    %v881 = vpop.f32.mrf.mxu0
    %882 = vmatprep.mubr.f32.mxu0 0.0
    %883 = vmatmul.mubr.f32.gmra.mxu0 %v801
    %v884 = vpop.f32.mrf.mxu0
    %v885 = vadd.f32 0.0, %v884
    %v886 = vpop.f32.mrf.mxu0
    %887 = vdwg.mxu0
    %v888 = vadd.f32 %v764, %v870
    %v889 = vadd.f32 %v769, %v875
    %v890 = vadd.f32 %v774, %v880
    %v891 = vadd.f32 %v779, %v885
    %v892 = vld [vmem:[%s5] sm:$0x1]
    %v894 = vlaneseq
    %v895 = vshrl.u32 %v894, 7
    %v896 = vsub.s32 0, %v895
    %v897 = vrot.slane %v892, %v896
    %v899 = vmul.f32 %v888, %v897
    %v900 = vmul.f32 %v889, %v897
    %v901 = vmul.f32 %v890, %v897
    %v902 = vmul.f32 %v891, %v897
    %v903 = vld [vmem:[%s6] sm:$0x1]
    %v905 = vlaneseq
    %v906 = vshrl.u32 %v905, 7
    %v907 = vsub.s32 0, %v906
    %v908 = vrot.slane %v903, %v907
    %v910 = vadd.f32 %v899, %v908
    %v911 = vadd.f32 %v900, %v908
    %v912 = vadd.f32 %v901, %v908
    %v913 = vadd.f32 %v902, %v908
    %v914 = vadd.f32 %v910, %v68
    %v915 = vadd.f32 %v911, %v69
    %v916 = vadd.f32 %v912, %v70
    %v917 = vadd.f32 %v913, %v71
    %vm918 = vcmp.gt.f32.partialorder %v914, 0.0
    %vm919 = vcmp.gt.f32.partialorder %v915, 0.0
    %vm920 = vcmp.gt.f32.partialorder %v916, 0.0
    %vm921 = vcmp.gt.f32.partialorder %v917, 0.0
    %v922 = vmul.f32 %v914, 0.2
    %v923 = vmul.f32 %v915, 0.2
    %v924 = vmul.f32 %v916, 0.2
    %v925 = vmul.f32 %v917, 0.2
    %v926 = vsel %vm918, %v914, %v922
    %v927 = vsel %vm919, %v915, %v923
    %v928 = vsel %vm920, %v916, %v924
    %v929 = vsel %vm921, %v917, %v925
    %930 = vst.msk [vmem:[#allocation8] sm:$0xff] %vm204, %v926
    %931 = vst.msk [vmem:[#allocation8 + $0x8] sm:$0xff] %vm204, %v927
    %932 = vst.msk [vmem:[#allocation8 + $0x10] sm:$0xff] %vm204, %v928
    %933 = vst.msk [vmem:[#allocation8 + $0x18] sm:$0xff] %vm204, %v929
    // Predicated region
    $region42: #{tpu_custom_call.1} parent=1 // pred_check
      _
    $region43: #{tpu_custom_call.1} parent=1 // pred_check_branch
      %935 = sbr.rel (0) target = $region45
    $region44: #{tpu_custom_call.1} parent=1 // pred_region
      %s937 = ssub.s32 512, 512
      %938 = vsyncadd [#allocation4], %s937
      %s939 = sshll.u32 [#allocation8], 4
      %s940 = int_to_ptr.vmem [resolvable:$true] %s939
      %945 = dma.vmem_to_hbm [thread:$0]  %s940, 512, %s7, [#allocation4], 128, 128, 8
    $region45: #{tpu_custom_call.1} parent=1 // pred_fallthru
      _
    // Predicated region
    $region46: #{tpu_custom_call.1} parent=1 // pred_check
      _
    $region47: #{tpu_custom_call.1} parent=1 // pred_check_branch
      %947 = sbr.rel (0) target = $region49
    $region48: #{tpu_custom_call.1} parent=1 // pred_region
      %948 = dma.done [#allocation4], 512
    $region49: #{tpu_custom_call.1} parent=1 // pred_fallthru
      _
    %949 = vsyncpa [#allocation3], 1
    %950 = vsyncpa [#allocation6], 1
    %951 = vsyncpa [#allocation4], 1

</llo_original>
